<compile_context>
chip_gen: v7x
topology: tpu7x:2x2x1
jax: 0.10.0
libtpu: 0.0.40
codegen_flags: <defaults>
</compile_context>

<pallas_src>
import math

import jax
import jax.numpy as jnp
from jax.experimental import pallas as pl
from jax.experimental.pallas import tpu as pltpu

TEMPERATURE = 0.1
INV_TEMPERATURE = 1.0 / TEMPERATURE  # == 10.0 exactly; <=1 ulp drift vs literal divide


def _lbp_kernel(x_ref, thr_ref, o_ref):
    # x_ref:   (TR, W) input tile
    # thr_ref: (1, W)  threshold row, broadcast over rows (resident in VMEM)
    # o_ref:   (TR, W) output tile
    z = (x_ref[...] - thr_ref[...]) * INV_TEMPERATURE
    o_ref[...] = jax.nn.sigmoid(z)


def _default_target_tile_bytes():
    """Per-generation input-tile size target (bandwidth-bound streaming op)."""
    try:
        kind = jax.devices()[0].device_kind.lower()
    except Exception:
        return 2 * 1024 * 1024
    if "v7" in kind:
        return 6 * 1024 * 1024   # ~24 MiB live (2 in + 2 out bufs) < 32 MiB scoped
    if "v6" in kind:
        return 4 * 1024 * 1024   # ~16 MiB live < 32 MiB scoped
    return 2 * 1024 * 1024       # v5e / unknown: ~8 MiB live < 16 MiB scoped


def lbp_forward(x, threshold, *, target_tile_bytes=None):
    """sigmoid((x - threshold) / 0.1).  x: [B, F], threshold: [F]."""
    B, F = x.shape
    assert threshold.shape == (F,)
    dtype = x.dtype
    itemsize = jnp.dtype(dtype).itemsize
    sub = max(8, 32 // itemsize)          # sublane multiple: 8 f32, 16 bf16, 32 int8

    if target_tile_bytes is None:
        target_tile_bytes = _default_target_tile_bytes()

    # ---- Layout choice -------------------------------------------------------
    # F < 128: group k consecutive batch rows into one slab row so the lane dim
    # (k*F) is a multiple of 128 -> full-width unmasked stores.  Otherwise block
    # directly with the full F as the lane dim (no extra HBM passes).
    use_slab = (F % 128 != 0) and (F < 128)
    if use_slab:
        k = 128 // math.gcd(F, 128)
        width = k * F
        rows = -(-B // k)                                  # cdiv(B, k)
        pad_b = rows * k - B
        x_in = jnp.pad(x, ((0, pad_b), (0, 0))) if pad_b else x
        x_in = x_in.reshape(rows, width)
        thr_row = jnp.tile(threshold, k).reshape(1, width).astype(dtype)
    else:
        k = 1
        width = F
        rows = B
        pad_b = 0
        x_in = x
        thr_row = threshold.reshape(1, F).astype(dtype)

    # ---- Tile sizing ---------------------------------------------------------
    bytes_per_row = max(width * itemsize, 1)
    tile_rows = max(sub, (target_tile_bytes // bytes_per_row) // sub * sub)
    # Prefer >= 2 grid steps so a 2-TC chip (v7x) can shard the "parallel" axis.
    half_rows = -(-rows // 2)
    tile_rows = min(tile_rows, max(sub, -(-half_rows // sub) * sub))
    if rows <= sub:
        tile_rows = rows                          # block == full array dim (legal)
    else:
        tile_rows = min(tile_rows, (rows // sub) * sub)   # never exceeds rows

    grid = (pl.cdiv(rows, tile_rows),)            # partial last block masked by Pallas

    cost = pl.CostEstimate(
        flops=5 * B * F,
        transcendentals=B * F,
        bytes_accessed=(2 * B * F + F) * itemsize,
    )

    out = pl.pallas_call(
        _lbp_kernel,
        out_shape=jax.ShapeDtypeStruct((rows, width), dtype),
        grid_spec=pltpu.PrefetchScalarGridSpec(
            num_scalar_prefetch=0,
            grid=grid,
            in_specs=[
                pl.BlockSpec((tile_rows, width), lambda i: (i, 0)),
                # Threshold row: same block every step -> stays resident in VMEM.
                pl.BlockSpec((1, width), lambda i: (0, 0)),
            ],
            out_specs=pl.BlockSpec((tile_rows, width), lambda i: (i, 0)),
        ),
        compiler_params=pltpu.CompilerParams(
            dimension_semantics=("parallel",),
        ),
        cost_estimate=cost,
    )(x_in, thr_row)

    if use_slab:
        out = out.reshape(rows * k, F)
        if pad_b:
            out = out[:B]
    return out


if __name__ == "__main__":
    key = jax.random.PRNGKey(0)
    kx, kt, kx2, kt2, kx3, kt3 = jax.random.split(key, 6)

    def _ref(x, thr):
        return jax.nn.sigmoid((x - thr[None, :]) / TEMPERATURE)

    # Case 1: small features (slab path, no batch padding): batch=16, features=32
    B, F = 16, 32
    x = jax.random.normal(kx, (B, F), dtype=jnp.float32)
    thr = jax.random.normal(kt, (F,), dtype=jnp.float32)
    out = jax.block_until_ready(lbp_forward(x, thr))
    assert out.shape == (B, F)
    assert jnp.allclose(out, _ref(x, thr), atol=1e-6, rtol=1e-5)

    # Case 2: ragged small features (slab path with batch pad): batch=37, features=20
    B2, F2 = 37, 20
    x2 = jax.random.normal(kx2, (B2, F2), dtype=jnp.float32)
    thr2 = jax.random.normal(kt2, (F2,), dtype=jnp.float32)
    out2 = jax.block_until_ready(lbp_forward(x2, thr2))
    assert out2.shape == (B2, F2)
    assert jnp.allclose(out2, _ref(x2, thr2), atol=1e-6, rtol=1e-5)

    # Case 3: large unaligned features (direct path, masked last lane tile only)
    B3, F3 = 70, 200
    x3 = jax.random.normal(kx3, (B3, F3), dtype=jnp.float32)
    thr3 = jax.random.normal(kt3, (F3,), dtype=jnp.float32)
    out3 = jax.block_until_ready(lbp_forward(x3, thr3))
    assert out3.shape == (B3, F3)
    assert jnp.allclose(out3, _ref(x3, thr3), atol=1e-6, rtol=1e-5)

    print("KERNEL_OK")
</pallas_src>

<mosaic_0001>
module attributes {stable_mosaic.version = 11 : i64} {
  func.func @_lbp_kernel(%arg0: i32, %arg1: memref<4x128xf32, #tpu.memory_space<vmem>>, %arg2: memref<1x128xf32, #tpu.memory_space<vmem>>, %arg3: memref<4x128xf32, #tpu.memory_space<vmem>>) attributes {dimension_semantics = [#tpu.dimension_semantics<parallel>], iteration_bounds = array<i64: 1>, scalar_prefetch = 0 : i64, scratch_operands = 0 : i64, tpu.core_type = #tpu.core_type<tc>, window_params = [{transform_indices = @transform_0, window_bounds = array<i64: 4, 128>}, {pipeline_mode = #tpu.pipeline_mode<synchronous>, transform_indices = @transform_1, window_bounds = array<i64: 1, 128>}, {transform_indices = @transform_2, window_bounds = array<i64: 4, 128>}]} {
    %c0 = arith.constant 0 : index
    %c0_0 = arith.constant 0 : index
    %0 = vector.load %arg1[%c0, %c0_0] : memref<4x128xf32, #tpu.memory_space<vmem>>, vector<4x128xf32>
    %c0_1 = arith.constant 0 : index
    %c0_2 = arith.constant 0 : index
    %1 = vector.load %arg2[%c0_1, %c0_2] : memref<1x128xf32, #tpu.memory_space<vmem>>, vector<1x128xf32>
    %2 = vector.broadcast %1 : vector<1x128xf32> to vector<4x128xf32>
    %3 = arith.subf %0, %2 : vector<4x128xf32>
    %cst = arith.constant 1.000000e+01 : f32
    %4 = vector.broadcast %cst : f32 to vector<4x128xf32>
    %5 = arith.mulf %3, %4 : vector<4x128xf32>
    %6 = arith.negf %5 : vector<4x128xf32>
    %7 = math.exp %6 : vector<4x128xf32>
    %cst_3 = arith.constant 1.000000e+00 : f32
    %8 = vector.broadcast %cst_3 : f32 to vector<4x128xf32>
    %9 = arith.addf %8, %7 : vector<4x128xf32>
    %10 = arith.divf %8, %9 : vector<4x128xf32>
    %c0_4 = arith.constant 0 : index
    %c0_5 = arith.constant 0 : index
    %11 = vector.load %arg3[%c0_4, %c0_5] : memref<4x128xf32, #tpu.memory_space<vmem>>, vector<4x128xf32>
    tpu.vector_store %arg3[%c0_4, %c0_5], %10 {strides = array<i32>} : memref<4x128xf32, #tpu.memory_space<vmem>>, vector<4x128xf32>,
    return
  }
  func.func @transform_0(%arg0: i32) -> (i32, i32) {
    %c0_i32 = arith.constant 0 : i32
    %c0_i32_0 = arith.constant 0 : i32
    return %arg0, %c0_i32 : i32, i32
  }
  func.func @transform_1(%arg0: i32) -> (i32, i32) {
    %c0_i32 = arith.constant 0 : i32
    %c0_i32_0 = arith.constant 0 : i32
    %c0_i32_1 = arith.constant 0 : i32
    return %c0_i32, %c0_i32_0 : i32, i32
  }
  func.func @transform_2(%arg0: i32) -> (i32, i32) {
    %c0_i32 = arith.constant 0 : i32
    %c0_i32_0 = arith.constant 0 : i32
    return %arg0, %c0_i32 : i32, i32
  }
}

</mosaic_0001>

<llo_original>
// kernel: tpu_custom_call.1
$region0: #{tpu_custom_call.1}
  #allocation0 [shape = 'u32[]', space=smem, size = 0x4, offset = 0x4, fixed_abs, tag = 'smem constant byte address 0x4 - core index']
  #allocation1 [shape = 'u32[144,128]{1,0:T(1,128)}', space=vmem, size = 0x12000, scoped, tag = 'internal scratch']
  %s0 = inlined_call_operand.hbm [shape: f32[4,128], index: 0, kind: input, shape index: {}]
  %s1 = inlined_call_operand.vmem [shape: f32[1,128], index: 1, kind: input, shape index: {}]
  %s2 = inlined_call_operand.hbm [shape: f32[4,128], index: 2, kind: output, shape index: {}]
  %s3 = sld [smem:[#allocation0]]
  $region22: #{tpu_custom_call.1} parent=0
    _
  %s5 = ssub.s32 1, %s3
  %s6 = scalar_select 0, %s5, %s3
  $region1: #{tpu_custom_call.1} parent=0
    #allocation2 [shape = 'u8[2048]{0}', space=vmem, size = 0x800, scoped, tag = 'input window, operand 0, single buffered']
    #allocation3 [shape = 's32[1]{0}', space=sflag, size = 0x4, scoped, tag = 'scoped memory for tpu_custom_call.1']
    #allocation4 [shape = 's32[1]{0}', space=sflag, size = 0x4, scoped, tag = 'scoped memory for tpu_custom_call.1']
    #allocation5 [shape = 'u8[2048]{0}', space=vmem, size = 0x800, scoped, tag = 'output window, operand 0, single buffered']
    %7 = vsyncpa [#allocation3], 0
    %8 = vsyncpa [#allocation4], 0
    // Predicated region
    $region2: #{tpu_custom_call.1} parent=1 // pred_check
      _
    $region3: #{tpu_custom_call.1} parent=1 // pred_check_branch
      %10 = sbr.rel (0) target = $region5
    $region4: #{tpu_custom_call.1} parent=1 // pred_region
      %s12 = ssub.s32 64, 64
      %13 = vsyncadd [#allocation3], %s12
      %s15 = sshll.u32 [#allocation2], 4
      %s16 = int_to_ptr.vmem [resolvable:$true] %s15
      %18 = dma.hbm_to_vmem [thread:$0]  %s0, 64, %s16, [#allocation3]
    $region5: #{tpu_custom_call.1} parent=1 // pred_fallthru
      _
    // Predicated region
    $region6: #{tpu_custom_call.1} parent=1 // pred_check
      _
    $region7: #{tpu_custom_call.1} parent=1 // pred_check_branch
      %20 = sbr.rel (0) target = $region9
    $region8: #{tpu_custom_call.1} parent=1 // pred_region
      _
    $region9: #{tpu_custom_call.1} parent=1 // pred_fallthru
      _
    // Predicated region
    $region10: #{tpu_custom_call.1} parent=1 // pred_check
      _
    $region11: #{tpu_custom_call.1} parent=1 // pred_check_branch
      %22 = sbr.rel (0) target = $region13
    $region12: #{tpu_custom_call.1} parent=1 // pred_region
      %23 = dma.done [#allocation3], 64
    $region13: #{tpu_custom_call.1} parent=1 // pred_fallthru
      _
    %v24 = vld [vmem:[#allocation2] sm:$0xf]
    %v25 = vld [vmem:[%s1] sm:$0x1]
    %v27 = vlaneseq
    %v28 = vshrl.u32 %v27, 7
    %v29 = vsub.s32 0, %v28
    %v30 = vrot.slane %v25, %v29
    %v32 = vsub.f32 %v24, %v30
    %v33 = vmul.f32 %v32, 10.0
    %v34 = vxor.u32 %v33, 2147483648
    %v35 = vmul.f32 %v34, 1.442695
    %v36 = vpow.pop %v35
    %v37 = vadd.f32 %v36, 1.0
    %v38 = vrcp.pop %v37
    %v39 = vmul.f32 1.0, %v38
    %40 = vst [vmem:[#allocation5] sm:$0xf] %v39
    // Predicated region
    $region14: #{tpu_custom_call.1} parent=1 // pred_check
      _
    $region15: #{tpu_custom_call.1} parent=1 // pred_check_branch
      %42 = sbr.rel (0) target = $region17
    $region16: #{tpu_custom_call.1} parent=1 // pred_region
      %s44 = ssub.s32 64, 64
      %45 = vsyncadd [#allocation4], %s44
      %s47 = sshll.u32 [#allocation5], 4
      %s48 = int_to_ptr.vmem [resolvable:$true] %s47
      %50 = dma.vmem_to_hbm [thread:$0]  %s48, 64, %s2, [#allocation4]
    $region17: #{tpu_custom_call.1} parent=1 // pred_fallthru
      _
    // Predicated region
    $region18: #{tpu_custom_call.1} parent=1 // pred_check
      _
    $region19: #{tpu_custom_call.1} parent=1 // pred_check_branch
      %52 = sbr.rel (0) target = $region21
    $region20: #{tpu_custom_call.1} parent=1 // pred_region
      %53 = dma.done [#allocation4], 64
    $region21: #{tpu_custom_call.1} parent=1 // pred_fallthru
      _
    %54 = vsyncpa [#allocation3], 1
    %55 = vsyncpa [#allocation4], 1

</llo_original>
